<compile_context>
chip_gen: v7x
topology: tpu7x:2x2x1
jax: 0.10.0
libtpu: 0.0.40
codegen_flags: <defaults>
</compile_context>

<pallas_src>
import functools
import math

import jax
import jax.numpy as jnp
from jax.experimental import pallas as pl
from jax.experimental.pallas import tpu as pltpu


def _round_up(x, m):
    return (x + m - 1) // m * m


# ----------------------------------------------------------------------------
# Kernel A: fused stand-in backbone conv + AdaptiveAvgPool2d((1,1))
#   x_flat : [M_pad, K_pad]   bf16   (M = B*T frames, K = CIN*H*W, zero-padded)
#   w_tiled: [K_pad, C_pad]   bf16   (conv weight tiled over spatial positions)
#   conv_b : [1, C_pad]       f32
#   out    : [M_pad, C_pad]   bf16   pooled representations
# Grid: (rows parallel, K-reduction arbitrary) with a f32 VMEM accumulator.
# ----------------------------------------------------------------------------
def _convpool_kernel(x_ref, w_ref, b_ref, out_ref, acc_ref, *, inv_p):
    k = pl.program_id(1)

    @pl.when(k == 0)
    def _():
        acc_ref[...] = jnp.zeros_like(acc_ref)

    acc_ref[...] += jnp.dot(
        x_ref[...], w_ref[...], preferred_element_type=jnp.float32
    )

    @pl.when(k == pl.num_programs(1) - 1)
    def _():
        out_ref[...] = (acc_ref[...] * inv_p + b_ref[...]).astype(out_ref.dtype)


def conv_pool(x_flat, w_tiled, conv_b, *, inv_p, bk):
    M, K = x_flat.shape
    C = w_tiled.shape[1]
    bm = math.gcd(M, 128)          # rows padded to mult. of 8 -> bm is 8..128
    assert K % bk == 0 and M % bm == 0
    return pl.pallas_call(
        functools.partial(_convpool_kernel, inv_p=inv_p),
        out_shape=jax.ShapeDtypeStruct((M, C), jnp.bfloat16),
        grid=(M // bm, K // bk),
        in_specs=[
            pl.BlockSpec((bm, bk), lambda i, k: (i, k)),
            pl.BlockSpec((bk, C), lambda i, k: (k, 0)),
            pl.BlockSpec((1, C), lambda i, k: (0, 0)),
        ],
        out_specs=pl.BlockSpec((bm, C), lambda i, k: (i, 0)),
        scratch_shapes=[pltpu.VMEM((bm, C), jnp.float32)],
        compiler_params=pltpu.CompilerParams(
            dimension_semantics=("parallel", "arbitrary"),
            vmem_limit_bytes=32 * 1024 * 1024,
        ),
    )(x_flat, w_tiled, conv_b)


# ----------------------------------------------------------------------------
# Kernel B (tiny): classifier matmul + temporal mean, fused.
#   pooled: [M_pad, C_pad] bf16, cls_w: [C_pad, Kc_pad] bf16, cls_b: [1, Kc_pad]
#   out   : [B, Kc_pad] f32   (out[b] = mean_t scores[b*T + t])
# ----------------------------------------------------------------------------
def _classify_mean_kernel(p_ref, w_ref, b_ref, out_ref, *, num_videos, num_frames):
    scores = (
        jnp.dot(p_ref[...], w_ref[...], preferred_element_type=jnp.float32)
        + b_ref[...]
    )                                                       # [M_pad, Kc_pad]
    inv_t = 1.0 / num_frames
    rows = []
    for b in range(num_videos):                             # static, small
        seg = scores[b * num_frames:(b + 1) * num_frames, :]
        rows.append(jnp.sum(seg, axis=0, keepdims=True) * inv_t)
    out_ref[...] = jnp.concatenate(rows, axis=0)


def classify_temporal_mean(pooled, cls_w, cls_b, *, num_videos, num_frames):
    M, C = pooled.shape
    Kc = cls_w.shape[1]
    return pl.pallas_call(
        functools.partial(
            _classify_mean_kernel, num_videos=num_videos, num_frames=num_frames
        ),
        out_shape=jax.ShapeDtypeStruct((num_videos, Kc), jnp.float32),
        grid=(1,),
        in_specs=[
            pl.BlockSpec((M, C), lambda i: (0, 0)),
            pl.BlockSpec((C, Kc), lambda i: (0, 0)),
            pl.BlockSpec((1, Kc), lambda i: (0, 0)),
        ],
        out_specs=pl.BlockSpec((num_videos, Kc), lambda i: (0, 0)),
    )(pooled, cls_w, cls_b)


# ----------------------------------------------------------------------------
# Model wrapper (plain-JAX glue: reshapes, weight tiling/padding, bf16 casts)
# ----------------------------------------------------------------------------
def base_model_forward(x, params, *, patch):
    """x: [B, T, 3, H, W] float32 (NCHW per frame) -> [B, num_class] float32."""
    B, T, CIN, H, W = x.shape
    assert H % patch == 0 and W % patch == 0
    BT = B * T
    oh, ow = H // patch, W // patch
    P = oh * ow
    C = params["conv_w"].shape[1]
    Kc = params["cls_w"].shape[1]

    BK = 256
    M_pad = _round_up(BT, 8)
    K_full = CIN * H * W
    K_pad = _round_up(K_full, BK)
    C_pad = _round_up(C, 128)
    Kc_pad = _round_up(Kc, 128)

    # Activations: flattening an NCHW frame is a pure reshape (no im2col copy).
    x_flat = x.reshape(BT, K_full).astype(jnp.bfloat16)
    x_flat = jnp.pad(x_flat, ((0, M_pad - BT), (0, K_pad - K_full)))

    # Weights: tile the 4x4 patch kernel over all spatial positions so that the
    # fused conv + global-avg-pool becomes a single matmul (exact identity for a
    # non-overlapping patchify conv followed by AdaptiveAvgPool2d((1,1))).
    conv_w = params["conv_w"].reshape(CIN, patch, patch, C)
    w_tiled = jnp.broadcast_to(
        conv_w[:, None, :, None, :, :], (CIN, oh, patch, ow, patch, C)
    ).reshape(K_full, C).astype(jnp.bfloat16)
    w_tiled = jnp.pad(w_tiled, ((0, K_pad - K_full), (0, C_pad - C)))
    conv_b = jnp.pad(params["conv_b"], ((0, 0), (0, C_pad - C)))      # f32

    pooled = conv_pool(x_flat, w_tiled, conv_b, inv_p=1.0 / P, bk=BK)  # [M_pad,C_pad]

    cls_w = jnp.pad(
        params["cls_w"].astype(jnp.bfloat16), ((0, C_pad - C), (0, Kc_pad - Kc))
    )
    cls_b = jnp.pad(params["cls_b"], ((0, 0), (0, Kc_pad - Kc)))      # f32

    out = classify_temporal_mean(
        pooled, cls_w, cls_b, num_videos=B, num_frames=T
    )                                                                  # [B, Kc_pad]
    return out[:, :Kc]


def init_params(key, *, cin, patch, num_channels, num_class):
    k1, k2 = jax.random.split(key)
    kin = cin * patch * patch
    # stand-in backbone conv weight/bias (deterministic)
    conv_w = jax.random.normal(k1, (kin, num_channels), jnp.float32) * (
        2.0 / kin
    ) ** 0.5
    conv_b = jnp.zeros((1, num_channels), jnp.float32)
    # classifier: kaiming_normal_ (fan_in = num_channels), zero bias — matches
    # the nn.Linear init in BaseModel.__init__
    cls_w_pt = jax.random.normal(k2, (num_class, num_channels), jnp.float32) * (
        2.0 / num_channels
    ) ** 0.5
    cls_w = cls_w_pt.T                                    # [C, K] for y = x @ W^T
    cls_b = jnp.zeros((1, num_class), jnp.float32)
    return {"conv_w": conv_w, "conv_b": conv_b, "cls_w": cls_w, "cls_b": cls_b}


if __name__ == "__main__":
    # small shapes consistent with the module
    B, T, CIN, H, W = 2, 3, 3, 16, 16
    PATCH = 4                  # stand-in backbone stride/kernel
    NUM_CHANNELS = 128         # backbone.num_channels (lane-dense)
    NUM_CLASS = 8              # args.num_activities

    key = jax.random.PRNGKey(0)
    kx, kp = jax.random.split(key)
    x = jax.random.normal(kx, (B, T, CIN, H, W), jnp.float32)
    params = init_params(
        kp, cin=CIN, patch=PATCH, num_channels=NUM_CHANNELS, num_class=NUM_CLASS
    )

    out = base_model_forward(x, params, patch=PATCH)
    out = jax.block_until_ready(out)
    assert out.shape == (B, NUM_CLASS)

    # pure-JAX reference: explicit im2col conv -> avg-pool -> linear -> mean_T,
    # computed in f32 from the same bf16-rounded operands the kernels consume.
    xb = x.astype(jnp.bfloat16).astype(jnp.float32)
    cwb = params["conv_w"].astype(jnp.bfloat16).astype(jnp.float32)
    lwb = params["cls_w"].astype(jnp.bfloat16).astype(jnp.float32)
    xf = xb.reshape(B * T, CIN, H, W)
    patches = (
        xf.reshape(B * T, CIN, H // PATCH, PATCH, W // PATCH, PATCH)
        .transpose(0, 2, 4, 1, 3, 5)
        .reshape(B * T * (H // PATCH) * (W // PATCH), CIN * PATCH * PATCH)
    )
    src_ref = patches @ cwb + params["conv_b"]
    src_ref = src_ref.reshape(B * T, (H // PATCH) * (W // PATCH), NUM_CHANNELS)
    pooled_ref = src_ref.mean(axis=1).astype(jnp.bfloat16).astype(jnp.float32)
    scores_ref = pooled_ref @ lwb + params["cls_b"]
    ref = scores_ref.reshape(B, T, NUM_CLASS).mean(axis=1)
    assert jnp.allclose(out, ref, atol=2e-2, rtol=2e-2)

    print("KERNEL_OK")
</pallas_src>

<mosaic_0001>
module attributes {stable_mosaic.version = 11 : i64} {
  func.func @_convpool_kernel(%arg0: i32, %arg1: i32, %arg2: memref<8x256xbf16, #tpu.memory_space<vmem>>, %arg3: memref<256x128xbf16, #tpu.memory_space<vmem>>, %arg4: memref<1x128xf32, #tpu.memory_space<vmem>>, %arg5: memref<8x128xbf16, #tpu.memory_space<vmem>>, %arg6: memref<8x128xf32, #tpu.memory_space<vmem>>) attributes {dimension_semantics = [#tpu.dimension_semantics<parallel>, #tpu.dimension_semantics<arbitrary>], iteration_bounds = array<i64: 1, 3>, scalar_prefetch = 0 : i64, scratch_operands = 1 : i64, tpu.core_type = #tpu.core_type<tc>, window_params = [{transform_indices = @transform_0, window_bounds = array<i64: 8, 256>}, {transform_indices = @transform_1, window_bounds = array<i64: 256, 128>}, {pipeline_mode = #tpu.pipeline_mode<synchronous>, transform_indices = @transform_2, window_bounds = array<i64: 1, 128>}, {transform_indices = @transform_3, window_bounds = array<i64: 8, 128>}]} {
    %c0_i32 = arith.constant 0 : i32
    %0 = arith.cmpi eq, %arg1, %c0_i32 : i32
    %1 = arith.extui %0 : i1 to i32
    %c0_i32_0 = arith.constant 0 : i32
    %2 = arith.cmpi ne, %1, %c0_i32_0 : i32
    scf.if %2 {
      %cst_9 = arith.constant 0.000000e+00 : f32
      %12 = vector.broadcast %cst_9 : f32 to vector<8x128xf32>
      %c0_10 = arith.constant 0 : index
      %c0_11 = arith.constant 0 : index
      %13 = vector.load %arg6[%c0_10, %c0_11] : memref<8x128xf32, #tpu.memory_space<vmem>>, vector<8x128xf32>
      tpu.vector_store %arg6[%c0_10, %c0_11], %12 {strides = array<i32>} : memref<8x128xf32, #tpu.memory_space<vmem>>, vector<8x128xf32>,
    } else {
    }
    %c0 = arith.constant 0 : index
    %c0_1 = arith.constant 0 : index
    %3 = vector.load %arg6[%c0, %c0_1] : memref<8x128xf32, #tpu.memory_space<vmem>>, vector<8x128xf32>
    %c0_2 = arith.constant 0 : index
    %c0_3 = arith.constant 0 : index
    %4 = vector.load %arg2[%c0_2, %c0_3] : memref<8x256xbf16, #tpu.memory_space<vmem>>, vector<8x256xbf16>
    %c0_4 = arith.constant 0 : index
    %c0_5 = arith.constant 0 : index
    %5 = vector.load %arg3[%c0_4, %c0_5] : memref<256x128xbf16, #tpu.memory_space<vmem>>, vector<256x128xbf16>
    %cst = arith.constant dense<0.000000e+00> : vector<8x128xf32>
    %6 = tpu.matmul %4, %5, %cst {dimension_numbers = #tpu.dot_dimension_numbers<[1], [0], [0], [1], [0, 0, 1, 1], [], []>} : vector<8x256xbf16>, vector<256x128xbf16>, vector<8x128xf32> -> vector<8x128xf32>
    %7 = arith.addf %3, %6 : vector<8x128xf32>
    %c0_6 = arith.constant 0 : index
    %c0_7 = arith.constant 0 : index
    %8 = vector.load %arg6[%c0_6, %c0_7] : memref<8x128xf32, #tpu.memory_space<vmem>>, vector<8x128xf32>
    tpu.vector_store %arg6[%c0_6, %c0_7], %7 {strides = array<i32>} : memref<8x128xf32, #tpu.memory_space<vmem>>, vector<8x128xf32>,
    %c2_i32 = arith.constant 2 : i32
    %9 = arith.cmpi eq, %arg1, %c2_i32 : i32
    %10 = arith.extui %9 : i1 to i32
    %c0_i32_8 = arith.constant 0 : i32
    %11 = arith.cmpi ne, %10, %c0_i32_8 : i32
    scf.if %11 {
      %c0_9 = arith.constant 0 : index
      %c0_10 = arith.constant 0 : index
      %12 = vector.load %arg6[%c0_9, %c0_10] : memref<8x128xf32, #tpu.memory_space<vmem>>, vector<8x128xf32>
      %cst_11 = arith.constant 6.250000e-02 : f32
      %13 = vector.broadcast %cst_11 : f32 to vector<8x128xf32>
      %14 = arith.mulf %12, %13 : vector<8x128xf32>
      %c0_12 = arith.constant 0 : index
      %c0_13 = arith.constant 0 : index
      %15 = vector.load %arg4[%c0_12, %c0_13] : memref<1x128xf32, #tpu.memory_space<vmem>>, vector<1x128xf32>
      %16 = vector.broadcast %15 : vector<1x128xf32> to vector<8x128xf32>
      %17 = arith.addf %14, %16 : vector<8x128xf32>
      %18 = arith.truncf %17 : vector<8x128xf32> to vector<8x128xbf16>
      %c0_14 = arith.constant 0 : index
      %c0_15 = arith.constant 0 : index
      %19 = vector.load %arg5[%c0_14, %c0_15] : memref<8x128xbf16, #tpu.memory_space<vmem>>, vector<8x128xbf16>
      tpu.vector_store %arg5[%c0_14, %c0_15], %18 {strides = array<i32>} : memref<8x128xbf16, #tpu.memory_space<vmem>>, vector<8x128xbf16>,
    } else {
    }
    return
  }
  func.func @transform_0(%arg0: i32, %arg1: i32) -> (i32, i32) {
    %c0_i32 = arith.constant 0 : i32
    return %arg0, %arg1 : i32, i32
  }
  func.func @transform_1(%arg0: i32, %arg1: i32) -> (i32, i32) {
    %c0_i32 = arith.constant 0 : i32
    %c0_i32_0 = arith.constant 0 : i32
    return %arg1, %c0_i32 : i32, i32
  }
  func.func @transform_2(%arg0: i32, %arg1: i32) -> (i32, i32) {
    %c0_i32 = arith.constant 0 : i32
    %c0_i32_0 = arith.constant 0 : i32
    %c0_i32_1 = arith.constant 0 : i32
    return %c0_i32, %c0_i32_0 : i32, i32
  }
  func.func @transform_3(%arg0: i32, %arg1: i32) -> (i32, i32) {
    %c0_i32 = arith.constant 0 : i32
    %c0_i32_0 = arith.constant 0 : i32
    return %arg0, %c0_i32 : i32, i32
  }
}

</mosaic_0001>

<llo_original>
// kernel: tpu_custom_call.1
$region0: #{tpu_custom_call.1}
  #allocation0 [shape = 'u32[]', space=smem, size = 0x4, offset = 0x4, fixed_abs, tag = 'smem constant byte address 0x4 - core index']
  #allocation1 [shape = 'u32[144,128]{1,0:T(1,128)}', space=vmem, size = 0x12000, scoped, tag = 'internal scratch']
  #allocation2 [shape = 'f32[8,128]{1,0:T(8,128)}', space=vmem, size = 0x1000, scoped, tag = 'scratch operand']
  %s0 = inlined_call_operand.hbm [shape: bf16[8,768], index: 0, kind: input, shape index: {}]
  %s1 = inlined_call_operand.hbm [shape: bf16[768,128], index: 1, kind: input, shape index: {}]
  %s2 = inlined_call_operand.vmem [shape: f32[1,128], index: 2, kind: input, shape index: {}]
  %s3 = inlined_call_operand.hbm [shape: bf16[8,128], index: 3, kind: output, shape index: {}]
  %s4 = sld [smem:[#allocation0]]
  $region61: #{tpu_custom_call.1} parent=0
    _
  %s6 = ssub.s32 1, %s4
  %s7 = scalar_select 0, %s6, %s4
  $region1: #{tpu_custom_call.1} parent=0
    #allocation3 [shape = 'u8[8192]{0}', space=vmem, size = 0x2000, scoped, tag = 'input window, operand 0']
    #allocation4 [shape = 's32[2]{0}', space=sflag, size = 0x8, scoped, tag = 'scoped memory for tpu_custom_call.1']
    #allocation5 [shape = 's32[2]{0}', space=sflag, size = 0x8, scoped, tag = 'scoped memory for tpu_custom_call.1']
    #allocation6 [shape = 'u8[131072]{0}', space=vmem, size = 0x20000, scoped, tag = 'input window, operand 1']
    #allocation7 [shape = 's32[2]{0}', space=sflag, size = 0x8, scoped, tag = 'scoped memory for tpu_custom_call.1']
    #allocation8 [shape = 'u8[2048]{0}', space=vmem, size = 0x800, scoped, tag = 'output window, operand 0, single buffered']
    %8 = vsyncpa [#allocation4], 0
    %s9 = scalar_lea.sflag [#allocation4], 1
    %10 = vsyncpa %s9, 0
    %11 = vsyncpa [#allocation7], 0
    %s12 = scalar_lea.sflag [#allocation7], 1
    %13 = vsyncpa %s12, 0
    %14 = vsyncpa [#allocation5], 0
    loop: start=0, step=1, limit=5
    $region2: #{tpu_custom_call.1} parent=1 // loop_pre_header
      _
    $region3: #{tpu_custom_call.1} parent=1 // loop_header
      %s16 = sphi 0, %s20
      %p17 = scmp.ge.s32.totalorder %s16, 5
      %s23 = sphi 0, %s35
      %s24 = sphi 0, %s31
      %s25 = sphi 0, %s23
      %s26 = sphi 0, %s24
      %s27 = sphi 0, %s25
      %s28 = sphi 0, %s26
      %s40 = sphi 0, %s42
      %s43 = sphi 0, %s40
      %s44 = sphi 0, %s43
      %s60 = sphi 0, %s44
      %s66 = sphi 0, %s68
      %s69 = sphi 0, %s66
      %s70 = sphi 0, %s69
      %s86 = sphi 0, %s70
      %s90 = sphi 0, %s90
      %s92 = sphi 0, %s90
      %s93 = sphi 0, %s92
      %s107 = sphi 0, %s93
      %s113 = sphi 0, %s115
      %s116 = sphi 0, %s113
      %s117 = sphi 0, %s116
      %s133 = sphi 0, %s117
    $region4: #{tpu_custom_call.1} parent=1 // loop_header_branch
      %19 = sbr.rel (%p17) target = $region8
    $region5: #{tpu_custom_call.1} parent=1 // loop_body
      %s21 = ssub.s32 %s16, 1
      %s22 = ssub.s32 %s16, 2
      %s29 = sadd.s32 1, %s24
      %p30 = scmp.ge.s32.totalorder %s29, 3
      %s31 = scalar_select %p30, 0, %s29
      %s32 = sadd.s32 1, %s23
      %s33 = scalar_select %p30, %s32, %s23
      %p34 = scmp.ge.s32.totalorder %s33, 1
      %s35 = scalar_select %p34, 0, %s33
      %s36 = ssub.s32 %s23, %s35
      %s37 = ssub.s32 %s24, %s31
      %s38 = sor.u32 %s36, %s37
      %p39 = scmp.eq.s32.totalorder %s38, 0
      %s41 = sadd.s32 %s40, 1
      %s42 = scalar_select %p39, %s40, %s41
      %p45 = pneg %p39
      %p46 = scmp.eq.s32.totalorder %s16, 2
      %p47 = por %p45, %p46
      %p48 = scmp.ne.s32.totalorder %s40, %s43
      %p49 = scmp.eq.s32.totalorder %s16, 0
      %p50 = por %p48, %p49
      %p51 = scmp.ne.s32.totalorder %s40, %s43
      %p52 = scmp.eq.s32.totalorder %s21, 2
      %p53 = por %p51, %p52
      %p54 = scmp.ne.s32.totalorder %s43, %s44
      %p55 = scmp.eq.s32.totalorder %s21, 0
      %p56 = por %p54, %p55
      %p57 = scmp.ne.s32.totalorder %s43, %s44
      %p58 = scmp.eq.s32.totalorder %s22, 2
      %p59 = por %p57, %p58
      %p61 = scmp.ne.s32.totalorder %s44, %s60
      %p62 = scmp.eq.s32.totalorder %s22, 0
      %p63 = por %p61, %p62
      %s64 = ssub.s32 %s24, %s31
      %p65 = scmp.eq.s32.totalorder %s64, 0
      %s67 = sadd.s32 %s66, 1
      %s68 = scalar_select %p65, %s66, %s67
      %p71 = pneg %p65
      %p72 = scmp.eq.s32.totalorder %s16, 2
      %p73 = por %p71, %p72
      %p74 = scmp.ne.s32.totalorder %s66, %s69
      %p75 = scmp.eq.s32.totalorder %s16, 0
      %p76 = por %p74, %p75
      %p77 = scmp.ne.s32.totalorder %s66, %s69
      %p78 = scmp.eq.s32.totalorder %s21, 2
      %p79 = por %p77, %p78
      %p80 = scmp.ne.s32.totalorder %s69, %s70
      %p81 = scmp.eq.s32.totalorder %s21, 0
      %p82 = por %p80, %p81
      %p83 = scmp.ne.s32.totalorder %s69, %s70
      %p84 = scmp.eq.s32.totalorder %s22, 2
      %p85 = por %p83, %p84
      %p87 = scmp.ne.s32.totalorder %s70, %s86
      %p88 = scmp.eq.s32.totalorder %s22, 0
      %p89 = por %p87, %p88
      %s91 = sadd.s32 %s90, 1
      %p94 = scmp.eq.s32.totalorder %s16, 2
      %p95 = scmp.ne.s32.totalorder %s90, %s92
      %p96 = scmp.eq.s32.totalorder %s16, 0
      %p97 = por %p95, %p96
      %p98 = scmp.ne.s32.totalorder %s90, %s92
      %p99 = scmp.eq.s32.totalorder %s21, 2
      %p100 = por %p98, %p99
      %p101 = scmp.ne.s32.totalorder %s92, %s93
      %p102 = scmp.eq.s32.totalorder %s21, 0
      %p103 = por %p101, %p102
      %p104 = scmp.ne.s32.totalorder %s92, %s93
      %p105 = scmp.eq.s32.totalorder %s22, 2
      %p106 = por %p104, %p105
      %p108 = scmp.ne.s32.totalorder %s93, %s107
      %p109 = scmp.eq.s32.totalorder %s22, 0
      %p110 = por %p108, %p109
      %s111 = ssub.s32 %s23, %s35
      %p112 = scmp.eq.s32.totalorder %s111, 0
      %s114 = sadd.s32 %s113, 1
      %s115 = scalar_select %p112, %s113, %s114
      %p118 = pneg %p112
      %p119 = scmp.eq.s32.totalorder %s16, 2
      %p120 = por %p118, %p119
      %p121 = scmp.ne.s32.totalorder %s113, %s116
      %p122 = scmp.eq.s32.totalorder %s16, 0
      %p123 = por %p121, %p122
      %p124 = scmp.ne.s32.totalorder %s113, %s116
      %p125 = scmp.eq.s32.totalorder %s21, 2
      %p126 = por %p124, %p125
      %p127 = scmp.ne.s32.totalorder %s116, %s117
      %p128 = scmp.eq.s32.totalorder %s21, 0
      %p129 = por %p127, %p128
      %p130 = scmp.ne.s32.totalorder %s116, %s117
      %p131 = scmp.eq.s32.totalorder %s22, 2
      %p132 = por %p130, %p131
      %p134 = scmp.ne.s32.totalorder %s117, %s133
      %p135 = scmp.eq.s32.totalorder %s22, 0
      %p136 = por %p134, %p135
      %p137 = scmp.le.s32.totalorder 1, %s16
      %p138 = scmp.lt.s32.totalorder %s16, 4
      %p139 = pnand %p137, %p138
      %p140 = pneg %p139
      // Predicated region
      $region9: #{tpu_custom_call.1} parent=5 // pred_check
        _
      $region10: #{tpu_custom_call.1} parent=5 // pred_check_branch
        %142 = sbr.rel (%p139) target = $region12
      $region11: #{tpu_custom_call.1} parent=5 // pred_region
        %s143 = ssub.s32 %s16, 1
        // Predicated region
        $region13: #{tpu_custom_call.1} parent=11 // pred_check
          %p144 = pneg %p103
        $region14: #{tpu_custom_call.1} parent=11 // pred_check_branch
          %146 = sbr.rel (%p144) target = $region16
        $region15: #{tpu_custom_call.1} parent=11 // pred_region
          _
        $region16: #{tpu_custom_call.1} parent=11 // pred_fallthru
          _
      $region12: #{tpu_custom_call.1} parent=5 // pred_fallthru
        _
      %p147 = scmp.lt.s32.totalorder %s16, 3
      // Predicated region
      $region17: #{tpu_custom_call.1} parent=5 // pred_check
        %p148 = pneg %p147
      $region18: #{tpu_custom_call.1} parent=5 // pred_check_branch
        %150 = sbr.rel (%p148) target = $region20
      $region19: #{tpu_custom_call.1} parent=5 // pred_region
        // Predicated region
        $region21: #{tpu_custom_call.1} parent=19 // pred_check
          %p151 = pneg %p50
        $region22: #{tpu_custom_call.1} parent=19 // pred_check_branch
          %153 = sbr.rel (%p151) target = $region24
        $region23: #{tpu_custom_call.1} parent=19 // pred_region
          %s154 = sand.u32 %s40, 1
          %s155 = scalar_lea.sflag [#allocation4], %s154
          %s156 = sand.u32 %s40, 1
          %s157 = smul.addr %s156, 8
          %s158 = scalar_lea.vmem [#allocation3], %s157
          %s159 = smul.u32 2, %s24
          %s161 = ssub.s32 128, 128
          %162 = vsyncadd %s155, %s161
          %s163 = smul.addr %s23, 6
          %s164 = sadd.s32 %s159, %s163
          %s165 = smul.addr %s164, 64
          %s166 = scalar_lea.hbm %s0, %s165
          %s168 = sshll.u32 %s158, 4
          %s169 = int_to_ptr.vmem [resolvable:$true] %s168
          %171 = dma.hbm_to_vmem [thread:$0]  %s166, 128, %s169, %s155
        $region24: #{tpu_custom_call.1} parent=19 // pred_fallthru
          _
        // Predicated region
        $region25: #{tpu_custom_call.1} parent=19 // pred_check
          %p172 = pneg %p76
        $region26: #{tpu_custom_call.1} parent=19 // pred_check_branch
          %174 = sbr.rel (%p172) target = $region28
        $region27: #{tpu_custom_call.1} parent=19 // pred_region
          %s175 = sand.u32 %s66, 1
          %s176 = scalar_lea.sflag [#allocation7], %s175
          %s177 = sand.u32 %s66, 1
          %s178 = smul.addr %s177, 128
          %s179 = scalar_lea.vmem [#allocation6], %s178
          %s180 = smul.u32 32, %s24
          %s182 = ssub.s32 2048, 2048
          %183 = vsyncadd %s176, %s182
          %s184 = smul.addr %s180, 64
          %s185 = scalar_lea.hbm %s1, %s184
          %s186 = sshll.u32 %s179, 4
          %s187 = int_to_ptr.vmem [resolvable:$true] %s186
          %192 = dma.hbm_to_vmem [thread:$0]  %s185, 2048, %s187, %s176, 64, 64, 4
        $region28: #{tpu_custom_call.1} parent=19 // pred_fallthru
          _
      $region20: #{tpu_custom_call.1} parent=5 // pred_fallthru
        _
      %p193 = scmp.le.s32.totalorder 1, %s16
      %p194 = scmp.lt.s32.totalorder %s16, 4
      %p195 = pnand %p193, %p194
      %p196 = pneg %p195
      // Predicated region
      $region29: #{tpu_custom_call.1} parent=5 // pred_check
        _
      $region30: #{tpu_custom_call.1} parent=5 // pred_check_branch
        %198 = sbr.rel (%p195) target = $region32
      $region31: #{tpu_custom_call.1} parent=5 // pred_region
        %s199 = ssub.s32 %s16, 1
        %s200 = sand.u32 %s43, 1
        %s201 = scalar_lea.sflag [#allocation4], %s200
        %s202 = sand.u32 %s43, 1
        %s203 = smul.addr %s202, 8
        %s204 = scalar_lea.vmem [#allocation3], %s203
        // Predicated region
        $region33: #{tpu_custom_call.1} parent=31 // pred_check
          %p205 = pneg %p56
        $region34: #{tpu_custom_call.1} parent=31 // pred_check_branch
          %207 = sbr.rel (%p205) target = $region36
        $region35: #{tpu_custom_call.1} parent=31 // pred_region
          %208 = dma.done %s201, 128
        $region36: #{tpu_custom_call.1} parent=31 // pred_fallthru
          _
        %s209 = sand.u32 %s69, 1
        %s210 = scalar_lea.sflag [#allocation7], %s209
        %s211 = sand.u32 %s69, 1
        %s212 = smul.addr %s211, 128
        %s213 = scalar_lea.vmem [#allocation6], %s212
        // Predicated region
        $region37: #{tpu_custom_call.1} parent=31 // pred_check
          %p214 = pneg %p82
        $region38: #{tpu_custom_call.1} parent=31 // pred_check_branch
          %216 = sbr.rel (%p214) target = $region40
        $region39: #{tpu_custom_call.1} parent=31 // pred_region
          %217 = dma.done %s210, 2048
        $region40: #{tpu_custom_call.1} parent=31 // pred_fallthru
          _
        %s218 = sand.u32 %s43, 1
        %s219 = scalar_lea.sflag [#allocation4], %s218
        %s220 = sand.u32 %s43, 1
        %s221 = smul.addr %s220, 8
        %s222 = scalar_lea.vmem [#allocation3], %s221
        %p223 = pneg %p56
        %p224 = pneg %p53
        %s225 = sand.u32 %s69, 1
        %s226 = scalar_lea.sflag [#allocation7], %s225
        %s227 = sand.u32 %s69, 1
        %s228 = smul.addr %s227, 128
        %s229 = scalar_lea.vmem [#allocation6], %s228
        %p230 = pneg %p82
        %p231 = pneg %p79
        %p232 = pneg %p103
        %p233 = pneg %p100
        %p234 = pneg %p129
        %p235 = pneg %p126
        %s236 = smul.u32 2, %s26
        %s237 = smul.u32 32, %s26
        %p239 = scmp.eq.s32.totalorder %s26, 0
        // Predicated region
        $region41: #{tpu_custom_call.1} parent=31 // pred_check
          %p240 = pneg %p239
        $region42: #{tpu_custom_call.1} parent=31 // pred_check_branch
          %242 = sbr.rel (%p240) target = $region44
        $region43: #{tpu_custom_call.1} parent=31 // pred_region
          %243 = vst [vmem:[#allocation2] sm:$0xff] 0.0
        $region44: #{tpu_custom_call.1} parent=31 // pred_fallthru
          _
        %v244 = vld [vmem:[#allocation2] sm:$0xff]
        %v245 = vld [vmem:[%s204] sm:$0xff]
        %v246 = vld [vmem:[%s213] sm:$0xf]
        %v247 = vld [vmem:[%s213 + $0x4] sm:$0xf]
        %v248 = vld [vmem:[%s213 + $0x8] sm:$0xf]
        %v249 = vld [vmem:[%s213 + $0xc] sm:$0xf]
        %v250 = vld [vmem:[%s213 + $0x10] sm:$0xf]
        %v251 = vld [vmem:[%s213 + $0x14] sm:$0xf]
        %v252 = vld [vmem:[%s213 + $0x18] sm:$0xf]
        %v253 = vld [vmem:[%s213 + $0x1c] sm:$0xf]
        %v254 = vld [vmem:[%s213 + $0x20] sm:$0xf]
        %v255 = vld [vmem:[%s213 + $0x24] sm:$0xf]
        %v256 = vld [vmem:[%s213 + $0x28] sm:$0xf]
        %v257 = vld [vmem:[%s213 + $0x2c] sm:$0xf]
        %v258 = vld [vmem:[%s213 + $0x30] sm:$0xf]
        %v259 = vld [vmem:[%s213 + $0x34] sm:$0xf]
        %v260 = vld [vmem:[%s213 + $0x38] sm:$0xf]
        %v261 = vld [vmem:[%s213 + $0x3c] sm:$0xf]
        %v262 = vld [vmem:[%s213 + $0x40] sm:$0xf]
        %v263 = vld [vmem:[%s213 + $0x44] sm:$0xf]
        %v264 = vld [vmem:[%s213 + $0x48] sm:$0xf]
        %v265 = vld [vmem:[%s213 + $0x4c] sm:$0xf]
        %v266 = vld [vmem:[%s213 + $0x50] sm:$0xf]
        %v267 = vld [vmem:[%s213 + $0x54] sm:$0xf]
        %v268 = vld [vmem:[%s213 + $0x58] sm:$0xf]
        %v269 = vld [vmem:[%s213 + $0x5c] sm:$0xf]
        %v270 = vld [vmem:[%s213 + $0x60] sm:$0xf]
        %v271 = vld [vmem:[%s213 + $0x64] sm:$0xf]
        %v272 = vld [vmem:[%s213 + $0x68] sm:$0xf]
        %v273 = vld [vmem:[%s213 + $0x6c] sm:$0xf]
        %v274 = vld [vmem:[%s213 + $0x70] sm:$0xf]
        %v275 = vld [vmem:[%s213 + $0x74] sm:$0xf]
        %v276 = vld [vmem:[%s213 + $0x78] sm:$0xf]
        %v277 = vld [vmem:[%s213 + $0x7c] sm:$0xf]
        %v279 = vunpack.c.l.b16 %v245
        %v280 = vunpack.c.h.b16 %v245
        %v281 = vpack.c.b16 %v279, %v279
        %v282 = vpack.c.b16 %v280, %v280
        %v317 = vunpack.c.l.b16 %v246
        %v318 = vunpack.c.l.b16 %v247
        %v319 = vunpack.c.l.b16 %v248
        %v320 = vunpack.c.l.b16 %v249
        %v321 = vunpack.c.l.b16 %v250
        %v322 = vunpack.c.l.b16 %v251
        %v323 = vunpack.c.l.b16 %v252
        %v324 = vunpack.c.l.b16 %v253
        %v325 = vunpack.c.l.b16 %v254
        %v326 = vunpack.c.l.b16 %v255
        %v327 = vunpack.c.l.b16 %v256
        %v328 = vunpack.c.l.b16 %v257
        %v329 = vunpack.c.l.b16 %v258
        %v330 = vunpack.c.l.b16 %v259
        %v331 = vunpack.c.l.b16 %v260
        %v332 = vunpack.c.l.b16 %v261
        %v333 = vunpack.c.l.b16 %v262
        %v334 = vunpack.c.l.b16 %v263
        %v335 = vunpack.c.l.b16 %v264
        %v336 = vunpack.c.l.b16 %v265
        %v337 = vunpack.c.l.b16 %v266
        %v338 = vunpack.c.l.b16 %v267
        %v339 = vunpack.c.l.b16 %v268
        %v340 = vunpack.c.l.b16 %v269
        %v341 = vunpack.c.l.b16 %v270
        %v342 = vunpack.c.l.b16 %v271
        %v343 = vunpack.c.l.b16 %v272
        %v344 = vunpack.c.l.b16 %v273
        %v345 = vunpack.c.l.b16 %v274
        %v346 = vunpack.c.l.b16 %v275
        %v347 = vunpack.c.l.b16 %v276
        %v348 = vunpack.c.l.b16 %v277
        %v349 = vpack.c.b16 %v318, %v317
        %v350 = vpack.c.b16 %v320, %v319
        %v351 = vpack.c.b16 %v322, %v321
        %v352 = vpack.c.b16 %v324, %v323
        %v353 = vpack.c.b16 %v326, %v325
        %v354 = vpack.c.b16 %v328, %v327
        %v355 = vpack.c.b16 %v330, %v329
        %v356 = vpack.c.b16 %v332, %v331
        %v357 = vpack.c.b16 %v334, %v333
        %v358 = vpack.c.b16 %v336, %v335
        %v359 = vpack.c.b16 %v338, %v337
        %v360 = vpack.c.b16 %v340, %v339
        %v361 = vpack.c.b16 %v342, %v341
        %v362 = vpack.c.b16 %v344, %v343
        %v363 = vpack.c.b16 %v346, %v345
        %v364 = vpack.c.b16 %v348, %v347
        %381 = vmatprep.subr.bf16.mxu0 0
        %382 = vmatpush1.bf16.msra.mxu0 %v349
        %383 = vmatprep.subr.bf16.mxu0 0
        %384 = vmatpush1.bf16.msra.mxu0 %v350
        %385 = vmatprep.subr.bf16.mxu0 0
        %386 = vmatpush1.bf16.msra.mxu0 %v351
        %387 = vmatprep.subr.bf16.mxu0 0
        %388 = vmatpush1.bf16.msra.mxu0 %v352
        %389 = vmatprep.subr.bf16.mxu0 0
        %390 = vmatpush1.bf16.msra.mxu0 %v353
        %391 = vmatprep.subr.bf16.mxu0 0
        %392 = vmatpush1.bf16.msra.mxu0 %v354
        %393 = vmatprep.subr.bf16.mxu0 0
        %394 = vmatpush1.bf16.msra.mxu0 %v355
        %395 = vmatprep.subr.bf16.mxu0 0
        %396 = vmatpush1.bf16.msra.mxu0 %v356
        %397 = vmatprep.subr.bf16.mxu0 0
        %398 = vmatpush1.bf16.msra.mxu0 %v357
        %399 = vmatprep.subr.bf16.mxu0 0
        %400 = vmatpush1.bf16.msra.mxu0 %v358
        %401 = vmatprep.subr.bf16.mxu0 0
        %402 = vmatpush1.bf16.msra.mxu0 %v359
        %403 = vmatprep.subr.bf16.mxu0 0
        %404 = vmatpush1.bf16.msra.mxu0 %v360
        %405 = vmatprep.subr.bf16.mxu0 0
        %406 = vmatpush1.bf16.msra.mxu0 %v361
        %407 = vmatprep.subr.bf16.mxu0 0
        %408 = vmatpush1.bf16.msra.mxu0 %v362
        %409 = vmatprep.subr.bf16.mxu0 0
        %410 = vmatpush1.bf16.msra.mxu0 %v363
        %411 = vmatprep.subr.bf16.mxu0 0
        %412 = vmatpush1.bf16.msra.mxu0 %v364
        %413 = vmatprep.mubr.bf16.mxu0 %v282
        %414 = vmatmul.mubr.bf16.gmra.mrb[0].mxu0 %v281
        %v415 = vpop.f32.mrb[0].mxu0
        %v416 = vadd.f32 0.0, %v415
        %v417 = vpop.f32.mrb[0].mxu0
        %v418 = vpop.f32.mrb[0].mxu0
        %v419 = vpop.f32.mrb[0].mxu0
        %420 = vdwg.mxu0
        %v421 = vadd.f32 %v244, %v416
        %422 = vst [vmem:[#allocation2] sm:$0xff] %v421
        %p423 = scmp.eq.s32.totalorder %s26, 2
        // Predicated region
        $region45: #{tpu_custom_call.1} parent=31 // pred_check
          %p424 = pneg %p423
        $region46: #{tpu_custom_call.1} parent=31 // pred_check_branch
          %426 = sbr.rel (%p424) target = $region48
        $region47: #{tpu_custom_call.1} parent=31 // pred_region
          %v427 = vld [vmem:[#allocation2] sm:$0xff]
          %v428 = vmul.f32 %v427, 0.0625
          %v429 = vld [vmem:[%s2] sm:$0x1]
          %v431 = vlaneseq
          %v432 = vshrl.u32 %v431, 7
          %v433 = vsub.s32 0, %v432
          %v434 = vrot.slane %v429, %v433
          %v436 = vadd.f32 %v428, %v434
          %v437 = vpack.c.bf16 %v436, %v436
          %438 = vst [vmem:[#allocation8] sm:$0xf] %v437
        $region48: #{tpu_custom_call.1} parent=31 // pred_fallthru
          _
        // Predicated region
        $region49: #{tpu_custom_call.1} parent=31 // pred_check
          %p439 = pneg %p126
        $region50: #{tpu_custom_call.1} parent=31 // pred_check_branch
          %441 = sbr.rel (%p439) target = $region52
        $region51: #{tpu_custom_call.1} parent=31 // pred_region
          %s443 = ssub.s32 64, 64
          %444 = vsyncadd [#allocation5], %s443
          %s445 = smul.addr %s25, 64
          %s446 = scalar_lea.hbm %s3, %s445
          %s448 = sshll.u32 [#allocation8], 4
          %s449 = int_to_ptr.vmem [resolvable:$true] %s448
          %451 = dma.vmem_to_hbm [thread:$0]  %s449, 64, %s446, [#allocation5]
        $region52: #{tpu_custom_call.1} parent=31 // pred_fallthru
          _
        // Predicated region
        $region53: #{tpu_custom_call.1} parent=31 // pred_check
          %p452 = pneg %p126
        $region54: #{tpu_custom_call.1} parent=31 // pred_check_branch
          %454 = sbr.rel (%p452) target = $region56
        $region55: #{tpu_custom_call.1} parent=31 // pred_region
          %455 = dma.done [#allocation5], 64
        $region56: #{tpu_custom_call.1} parent=31 // pred_fallthru
          _
      $region32: #{tpu_custom_call.1} parent=5 // pred_fallthru
        _
      %p456 = scmp.le.s32.totalorder 2, %s16
      // Predicated region
      $region57: #{tpu_custom_call.1} parent=5 // pred_check
        %p457 = pneg %p456
      $region58: #{tpu_custom_call.1} parent=5 // pred_check_branch
        %459 = sbr.rel (%p457) target = $region60
      $region59: #{tpu_custom_call.1} parent=5 // pred_region
        %s460 = ssub.s32 %s16, 2
      $region60: #{tpu_custom_call.1} parent=5 // pred_fallthru
        _
    $region6: #{tpu_custom_call.1} parent=1 // loop_footer
      %s20 = sadd.s32 1, %s16
    $region7: #{tpu_custom_call.1} parent=1 // loop_footer_branch
      %15 = sbr.rel target = $region3
    $region8: #{tpu_custom_call.1} parent=1 // loop_exit
      _
    %461 = vsyncpa [#allocation4], 1
    %s462 = scalar_lea.sflag [#allocation4], 1
    %463 = vsyncpa %s462, 1
    %464 = vsyncpa [#allocation7], 1
    %s465 = scalar_lea.sflag [#allocation7], 1
    %466 = vsyncpa %s465, 1
    %467 = vsyncpa [#allocation5], 1
    %s468 = scalar_lea.sflag [#allocation5], 1
    %469 = vsyncpa %s468, 1

</llo_original>
